<compile_context>
chip_gen: v6e
topology: v6e:2x2x1
jax: 0.10.0
libtpu: 0.0.40
codegen_flags: <defaults>
</compile_context>

<pallas_src>
import functools

import jax
import jax.numpy as jnp
from jax.experimental import pallas as pl
from jax.experimental.pallas import tpu as pltpu


def _round_up(n: int, m: int) -> int:
    return ((n + m - 1) // m) * m


def _cores_per_chip() -> int:
    """Best-effort TensorCore count per chip (2 on v7x, 1 on v5e/v6e)."""
    try:
        return int(getattr(jax.devices()[0], "num_cores", 1) or 1)
    except Exception:
        return 1


def _bias_layer_kernel(x_ref, w1_ref, b1_ref, w234_ref, b234_ref, o_ref):
    """One grid step pushes a [tb, D] row tile through the folded MLP.

    ReLU(x @ W1 + b1) @ W234 + b234 -> ReLU.  Both matmuls accumulate in f32 on
    the MXU; bias add + ReLU stay in f32 on the VPU (safe for v5e's f32-only VPU).
    Intermediates never touch HBM; weights stay VMEM-resident across the grid.
    """
    cd = w1_ref.dtype  # MXU feed dtype (bf16 or f32); accumulation is always f32.

    h = jnp.dot(x_ref[...].astype(cd), w1_ref[...],
                preferred_element_type=jnp.float32) + b1_ref[...]
    h = jnp.maximum(h, 0.0)                                  # ReLU after fc1
    h = jnp.dot(h.astype(cd), w234_ref[...],
                preferred_element_type=jnp.float32) + b234_ref[...]
    o_ref[...] = jnp.maximum(h, 0.0).astype(o_ref.dtype)     # ReLU after fc4


@functools.partial(jax.jit, static_argnames=("tb",))
def _forward_impl(x, w1, b1, w234, b234, *, tb):
    B, D = x.shape
    H2 = w1.shape[1]
    grid = (pl.cdiv(B, tb),)  # ragged tail handled by Pallas masked tail stores

    resident = pl.Buffered(buffer_count=1)  # constant index_map -> single VMEM copy

    def full_spec(shape):
        return pl.BlockSpec(shape, lambda i: (0, 0), pipeline_mode=resident)

    grid_spec = pltpu.PrefetchScalarGridSpec(
        num_scalar_prefetch=0,
        grid=grid,
        in_specs=[
            pl.BlockSpec((tb, D), lambda i: (i, 0)),  # x row tile (unpadded, 32 lanes)
            full_spec(w1.shape), full_spec(b1.shape),
            full_spec(w234.shape), full_spec(b234.shape),
        ],
        out_specs=pl.BlockSpec((tb, D), lambda i: (i, 0)),
    )

    # Honest VMEM budget (actual need + margin), true-dim cost estimate.
    w_item = jnp.dtype(w1.dtype).itemsize
    x_item = jnp.dtype(x.dtype).itemsize
    w_bytes = (D * H2 + H2 * D) * w_item + (H2 + D) * 4
    io_bytes = 2 * tb * D * 2 * x_item            # double-buffered x + out tiles
    interm_bytes = 4 * tb * H2 * 4                # live intermediates (generous)
    vmem_limit = int(min(96 << 20, max(4 << 20, 2 * (w_bytes + io_bytes + interm_bytes))))

    flops = 2 * B * D * H2 * 2                    # two (D x H2)-shaped matmuls per row
    bytes_accessed = 2 * B * D * x_item + w_bytes

    return pl.pallas_call(
        _bias_layer_kernel,
        out_shape=jax.ShapeDtypeStruct((B, D), x.dtype),
        grid_spec=grid_spec,
        compiler_params=pltpu.CompilerParams(
            dimension_semantics=("parallel",),
            vmem_limit_bytes=vmem_limit,
        ),
        cost_estimate=pl.CostEstimate(
            flops=flops, transcendentals=0, bytes_accessed=bytes_accessed),
    )(x, w1, b1, w234, b234)


def bias_layer_forward(x, prepared_params, *, block_rows=None):
    """x: [B, D] -> [B, D].  `prepared_params` from prepare_bias_layer_params()."""
    w1, b1, w234, b234 = prepared_params
    B, _ = x.shape
    if block_rows is None:
        cores = _cores_per_chip()
        if cores > 1:
            # >= cores grid steps so "parallel" sharding feeds every TensorCore (v7x).
            block_rows = max(8, _round_up(pl.cdiv(B, cores), 8))
        else:
            # single TC (v5e/v6e): one big tile -> fewest per-step overheads.
            block_rows = 512
    tb = max(8, min(_round_up(block_rows, 8), _round_up(B, 8)))
    return _forward_impl(x, w1, b1, w234, b234, tb=tb)


def prepare_bias_layer_params(params, *, use_bf16=True):
    """One-time parameter prep (hoisted out of the forward hot path).

    Folds the activation-free fc2·fc3·fc4 chain into one weight/bias and casts
    weights to the MXU feed dtype.  Weights are stored [in, out] (transposed vs.
    PyTorch); biases are returned as (1, out) f32 rows.

    Note: after the fold the resident weights are only ~4*D^2 elements, so they
    stay fully VMEM-resident far beyond any realistic input_dim, even on v7x's
    64 MiB VMEM (for D in the several-thousands, switch to streamed weights via
    pltpu.emit_pipeline).
    """
    hp = jax.lax.Precision.HIGHEST
    (w1, b1), (w2, b2) = params["fc1"], params["fc2"]
    (w3, b3), (w4, b4) = params["fc3"], params["fc4"]

    w234 = jnp.dot(jnp.dot(w2, w3, precision=hp), w4, precision=hp)
    b234 = (jnp.dot(jnp.dot(b2, w3, precision=hp), w4, precision=hp)
            + jnp.dot(b3, w4, precision=hp) + b4)

    cd = jnp.bfloat16 if use_bf16 else jnp.float32
    return (w1.astype(cd), b1[None, :].astype(jnp.float32),
            w234.astype(cd), b234[None, :].astype(jnp.float32))


def init_bias_layer_params(key, input_dim):
    """nn.Linear-style U(-1/sqrt(fan_in), 1/sqrt(fan_in)); weights stored [in, out]."""
    dims = [
        ("fc1", input_dim, input_dim * 2),
        ("fc2", input_dim * 2, input_dim * 4),
        ("fc3", input_dim * 4, input_dim * 2),
        ("fc4", input_dim * 2, input_dim),
    ]
    params = {}
    for name, fan_in, fan_out in dims:
        key, kw, kb = jax.random.split(key, 3)
        bound = 1.0 / (fan_in ** 0.5)
        w = jax.random.uniform(kw, (fan_in, fan_out), jnp.float32, -bound, bound)
        b = jax.random.uniform(kb, (fan_out,), jnp.float32, -bound, bound)
        params[name] = (w, b)
    return params


def bias_layer_reference(x, params):
    """Pure-JAX reference of the PyTorch forward (highest-precision f32 dots)."""
    hp = jax.lax.Precision.HIGHEST
    (w1, b1), (w2, b2) = params["fc1"], params["fc2"]
    (w3, b3), (w4, b4) = params["fc3"], params["fc4"]
    h = jnp.maximum(jnp.dot(x, w1, precision=hp) + b1, 0.0)
    h = jnp.dot(h, w2, precision=hp) + b2
    h = jnp.dot(h, w3, precision=hp) + b3
    h = jnp.dot(h, w4, precision=hp) + b4
    return jnp.maximum(h, 0.0)


if __name__ == "__main__":
    key = jax.random.PRNGKey(0)
    input_dim = 32

    kp, kx = jax.random.split(key)
    params = init_bias_layer_params(kp, input_dim)

    # One-time parameter prep (fold + cast) — this is the cached, reused state.
    prep_f32 = prepare_bias_layer_params(params, use_bf16=False)
    prep_bf16 = prepare_bias_layer_params(params, use_bf16=True)   # default / fast path

    # Batch sizes deliberately NOT multiples of the row tile -> exercises the
    # cdiv grid's masked tail stores on every chip generation.
    for batch in (500, 37):
        kx, kb = jax.random.split(kx)
        x = jax.random.normal(kb, (batch, input_dim), jnp.float32)
        ref = bias_layer_reference(x, params)

        # Strict f32 MXU path (only the fold reorders f32 rounding).
        out = jax.block_until_ready(bias_layer_forward(x, prep_f32))
        assert out.shape == (batch, input_dim), out.shape
        assert jnp.allclose(out, ref, atol=1e-4, rtol=1e-4), \
            f"f32 mismatch vs reference (batch={batch})"

        # Default bf16-fed MXU path (f32 accumulation / bias / ReLU).
        out_bf16 = jax.block_until_ready(bias_layer_forward(x, prep_bf16))
        assert out_bf16.shape == (batch, input_dim), out_bf16.shape
        assert jnp.allclose(out_bf16, ref, atol=5e-2, rtol=5e-2), \
            f"bf16 mismatch vs reference (batch={batch})"

    print("KERNEL_OK")
</pallas_src>

<mosaic_0001>
module attributes {stable_mosaic.version = 11 : i64} {
  func.func @_bias_layer_kernel(%arg0: i32, %arg1: memref<504x32xf32, #tpu.memory_space<vmem>>, %arg2: memref<32x64xf32, #tpu.memory_space<vmem>>, %arg3: memref<1x64xf32, #tpu.memory_space<vmem>>, %arg4: memref<64x32xf32, #tpu.memory_space<vmem>>, %arg5: memref<1x32xf32, #tpu.memory_space<vmem>>, %arg6: memref<504x32xf32, #tpu.memory_space<vmem>>) attributes {dimension_semantics = [#tpu.dimension_semantics<parallel>], iteration_bounds = array<i64: 1>, scalar_prefetch = 0 : i64, scratch_operands = 0 : i64, tpu.core_type = #tpu.core_type<tc>, window_params = [{transform_indices = @transform_0, window_bounds = array<i64: 504, 32>}, {pipeline_mode = #tpu.pipeline_mode<synchronous>, transform_indices = @transform_1, window_bounds = array<i64: 32, 64>}, {pipeline_mode = #tpu.pipeline_mode<synchronous>, transform_indices = @transform_2, window_bounds = array<i64: 1, 64>}, {pipeline_mode = #tpu.pipeline_mode<synchronous>, transform_indices = @transform_3, window_bounds = array<i64: 64, 32>}, {pipeline_mode = #tpu.pipeline_mode<synchronous>, transform_indices = @transform_4, window_bounds = array<i64: 1, 32>}, {transform_indices = @transform_5, window_bounds = array<i64: 504, 32>}]} {
    %c0 = arith.constant 0 : index
    %c0_0 = arith.constant 0 : index
    %0 = vector.load %arg1[%c0, %c0_0] : memref<504x32xf32, #tpu.memory_space<vmem>>, vector<504x32xf32>
    %c0_1 = arith.constant 0 : index
    %c0_2 = arith.constant 0 : index
    %1 = vector.load %arg2[%c0_1, %c0_2] : memref<32x64xf32, #tpu.memory_space<vmem>>, vector<32x64xf32>
    %cst = arith.constant dense<0.000000e+00> : vector<504x64xf32>
    %2 = tpu.matmul %0, %1, %cst {dimension_numbers = #tpu.dot_dimension_numbers<[1], [0], [0], [1], [0, 0, 1, 1], [], []>} : vector<504x32xf32>, vector<32x64xf32>, vector<504x64xf32> -> vector<504x64xf32>
    %c0_3 = arith.constant 0 : index
    %c0_4 = arith.constant 0 : index
    %3 = vector.load %arg3[%c0_3, %c0_4] : memref<1x64xf32, #tpu.memory_space<vmem>>, vector<1x64xf32>
    %4 = vector.broadcast %3 : vector<1x64xf32> to vector<504x64xf32>
    %5 = arith.addf %2, %4 : vector<504x64xf32>
    %cst_5 = arith.constant 0.000000e+00 : f32
    %6 = vector.broadcast %cst_5 : f32 to vector<504x64xf32>
    %7 = arith.maximumf %5, %6 : vector<504x64xf32>
    %c0_6 = arith.constant 0 : index
    %c0_7 = arith.constant 0 : index
    %8 = vector.load %arg4[%c0_6, %c0_7] : memref<64x32xf32, #tpu.memory_space<vmem>>, vector<64x32xf32>
    %cst_8 = arith.constant dense<0.000000e+00> : vector<504x32xf32>
    %9 = tpu.matmul %7, %8, %cst_8 {dimension_numbers = #tpu.dot_dimension_numbers<[1], [0], [0], [1], [0, 0, 1, 1], [], []>} : vector<504x64xf32>, vector<64x32xf32>, vector<504x32xf32> -> vector<504x32xf32>
    %c0_9 = arith.constant 0 : index
    %c0_10 = arith.constant 0 : index
    %10 = vector.load %arg5[%c0_9, %c0_10] : memref<1x32xf32, #tpu.memory_space<vmem>>, vector<1x32xf32>
    %11 = vector.broadcast %10 : vector<1x32xf32> to vector<504x32xf32>
    %12 = arith.addf %9, %11 : vector<504x32xf32>
    %cst_11 = arith.constant 0.000000e+00 : f32
    %13 = vector.broadcast %cst_11 : f32 to vector<504x32xf32>
    %14 = arith.maximumf %12, %13 : vector<504x32xf32>
    %c0_12 = arith.constant 0 : index
    %c0_13 = arith.constant 0 : index
    %15 = vector.load %arg6[%c0_12, %c0_13] : memref<504x32xf32, #tpu.memory_space<vmem>>, vector<504x32xf32>
    tpu.vector_store %arg6[%c0_12, %c0_13], %14 {strides = array<i32>} : memref<504x32xf32, #tpu.memory_space<vmem>>, vector<504x32xf32>,
    return
  }
  func.func @transform_0(%arg0: i32) -> (i32, i32) {
    %c0_i32 = arith.constant 0 : i32
    %c0_i32_0 = arith.constant 0 : i32
    return %arg0, %c0_i32 : i32, i32
  }
  func.func @transform_1(%arg0: i32) -> (i32, i32) {
    %c0_i32 = arith.constant 0 : i32
    %c0_i32_0 = arith.constant 0 : i32
    %c0_i32_1 = arith.constant 0 : i32
    return %c0_i32, %c0_i32_0 : i32, i32
  }
  func.func @transform_2(%arg0: i32) -> (i32, i32) {
    %c0_i32 = arith.constant 0 : i32
    %c0_i32_0 = arith.constant 0 : i32
    %c0_i32_1 = arith.constant 0 : i32
    return %c0_i32, %c0_i32_0 : i32, i32
  }
  func.func @transform_3(%arg0: i32) -> (i32, i32) {
    %c0_i32 = arith.constant 0 : i32
    %c0_i32_0 = arith.constant 0 : i32
    %c0_i32_1 = arith.constant 0 : i32
    return %c0_i32, %c0_i32_0 : i32, i32
  }
  func.func @transform_4(%arg0: i32) -> (i32, i32) {
    %c0_i32 = arith.constant 0 : i32
    %c0_i32_0 = arith.constant 0 : i32
    %c0_i32_1 = arith.constant 0 : i32
    return %c0_i32, %c0_i32_0 : i32, i32
  }
  func.func @transform_5(%arg0: i32) -> (i32, i32) {
    %c0_i32 = arith.constant 0 : i32
    %c0_i32_0 = arith.constant 0 : i32
    return %arg0, %c0_i32 : i32, i32
  }
}

</mosaic_0001>

<llo_original>
// kernel: _forward_impl.1
$region0: #{_forward_impl.1}
  #allocation0 [shape = 'u32[]', space=smem, size = 0x4, offset = 0x4, fixed_abs, tag = 'smem constant byte address 0x4 - core index']
  #allocation1 [shape = 'u32[144,128]{1,0:T(1,128)}', space=vmem, size = 0x12000, scoped, tag = 'internal scratch']
  %s0 = inlined_call_operand.vmem [shape: f32[500,32], index: 0, kind: input, shape index: {}]
  %s1 = inlined_call_operand.vmem [shape: f32[32,64], index: 1, kind: input, shape index: {}]
  %s2 = inlined_call_operand.vmem [shape: f32[1,64], index: 2, kind: input, shape index: {}]
  %s3 = inlined_call_operand.vmem [shape: f32[64,32], index: 3, kind: input, shape index: {}]
  %s4 = inlined_call_operand.vmem [shape: f32[1,32], index: 4, kind: input, shape index: {}]
  %s5 = inlined_call_operand.vmem [shape: f32[500,32], index: 5, kind: output, shape index: {}]
  %s6 = sld [smem:[#allocation0]]
  $region30: #{_forward_impl.1} parent=0
    _
  %s8 = ssub.s32 1, %s6
  %s9 = scalar_select 0, %s8, %s6
  // Predicated region
  $region2: #{_forward_impl.1} parent=0 // pred_check
    _
  $region3: #{_forward_impl.1} parent=0 // pred_check_branch
    %11 = sbr.rel (0) target = $region5
  $region4: #{_forward_impl.1} parent=0 // pred_region
    _
  $region5: #{_forward_impl.1} parent=0 // pred_fallthru
    _
  // Predicated region
  $region6: #{_forward_impl.1} parent=0 // pred_check
    _
  $region7: #{_forward_impl.1} parent=0 // pred_check_branch
    %13 = sbr.rel (0) target = $region9
  $region8: #{_forward_impl.1} parent=0 // pred_region
    _
  $region9: #{_forward_impl.1} parent=0 // pred_fallthru
    _
  // Predicated region
  $region10: #{_forward_impl.1} parent=0 // pred_check
    _
  $region11: #{_forward_impl.1} parent=0 // pred_check_branch
    %15 = sbr.rel (0) target = $region13
  $region12: #{_forward_impl.1} parent=0 // pred_region
    _
  $region13: #{_forward_impl.1} parent=0 // pred_fallthru
    _
  // Predicated region
  $region14: #{_forward_impl.1} parent=0 // pred_check
    _
  $region15: #{_forward_impl.1} parent=0 // pred_check_branch
    %17 = sbr.rel (0) target = $region17
  $region16: #{_forward_impl.1} parent=0 // pred_region
    _
  $region17: #{_forward_impl.1} parent=0 // pred_fallthru
    _
  // Predicated region
  $region18: #{_forward_impl.1} parent=0 // pred_check
    _
  $region19: #{_forward_impl.1} parent=0 // pred_check_branch
    %19 = sbr.rel (0) target = $region21
  $region20: #{_forward_impl.1} parent=0 // pred_region
    _
  $region21: #{_forward_impl.1} parent=0 // pred_fallthru
    _
  %v20 = vld [vmem:[%s0] sm:$0xff]
  %v21 = vld [vmem:[%s0 + $0x8] sm:$0xff]
  %v22 = vld [vmem:[%s0 + $0x10] sm:$0xff]
  %v23 = vld [vmem:[%s0 + $0x18] sm:$0xff]
  %v24 = vld [vmem:[%s0 + $0x20] sm:$0xff]
  %v25 = vld [vmem:[%s0 + $0x28] sm:$0xff]
  %v26 = vld [vmem:[%s0 + $0x30] sm:$0xff]
  %v27 = vld [vmem:[%s0 + $0x38] sm:$0xff]
  %v28 = vld [vmem:[%s0 + $0x40] sm:$0xff]
  %v29 = vld [vmem:[%s0 + $0x48] sm:$0xff]
  %v30 = vld [vmem:[%s0 + $0x50] sm:$0xff]
  %v31 = vld [vmem:[%s0 + $0x58] sm:$0xff]
  %v32 = vld [vmem:[%s0 + $0x60] sm:$0xff]
  %v33 = vld [vmem:[%s0 + $0x68] sm:$0xff]
  %v34 = vld [vmem:[%s0 + $0x70] sm:$0xff]
  %v35 = vld [vmem:[%s0 + $0x78] sm:$0xff]
  %v36 = vld [vmem:[%s0 + $0x80] sm:$0xff]
  %v37 = vld [vmem:[%s0 + $0x88] sm:$0xff]
  %v38 = vld [vmem:[%s0 + $0x90] sm:$0xff]
  %v39 = vld [vmem:[%s0 + $0x98] sm:$0xff]
  %v40 = vld [vmem:[%s0 + $0xa0] sm:$0xff]
  %v41 = vld [vmem:[%s0 + $0xa8] sm:$0xff]
  %v42 = vld [vmem:[%s0 + $0xb0] sm:$0xff]
  %v43 = vld [vmem:[%s0 + $0xb8] sm:$0xff]
  %v44 = vld [vmem:[%s0 + $0xc0] sm:$0xff]
  %v45 = vld [vmem:[%s0 + $0xc8] sm:$0xff]
  %v46 = vld [vmem:[%s0 + $0xd0] sm:$0xff]
  %v47 = vld [vmem:[%s0 + $0xd8] sm:$0xff]
  %v48 = vld [vmem:[%s0 + $0xe0] sm:$0xff]
  %v49 = vld [vmem:[%s0 + $0xe8] sm:$0xff]
  %v50 = vld [vmem:[%s0 + $0xf0] sm:$0xff]
  %v51 = vld [vmem:[%s0 + $0xf8] sm:$0xff]
  %v52 = vld [vmem:[%s0 + $0x100] sm:$0xff]
  %v53 = vld [vmem:[%s0 + $0x108] sm:$0xff]
  %v54 = vld [vmem:[%s0 + $0x110] sm:$0xff]
  %v55 = vld [vmem:[%s0 + $0x118] sm:$0xff]
  %v56 = vld [vmem:[%s0 + $0x120] sm:$0xff]
  %v57 = vld [vmem:[%s0 + $0x128] sm:$0xff]
  %v58 = vld [vmem:[%s0 + $0x130] sm:$0xff]
  %v59 = vld [vmem:[%s0 + $0x138] sm:$0xff]
  %v60 = vld [vmem:[%s0 + $0x140] sm:$0xff]
  %v61 = vld [vmem:[%s0 + $0x148] sm:$0xff]
  %v62 = vld [vmem:[%s0 + $0x150] sm:$0xff]
  %v63 = vld [vmem:[%s0 + $0x158] sm:$0xff]
  %v64 = vld [vmem:[%s0 + $0x160] sm:$0xff]
  %v65 = vld [vmem:[%s0 + $0x168] sm:$0xff]
  %v66 = vld [vmem:[%s0 + $0x170] sm:$0xff]
  %v67 = vld [vmem:[%s0 + $0x178] sm:$0xff]
  %v68 = vld [vmem:[%s0 + $0x180] sm:$0xff]
  %v69 = vld [vmem:[%s0 + $0x188] sm:$0xff]
  %v70 = vld [vmem:[%s0 + $0x190] sm:$0xff]
  %v71 = vld [vmem:[%s0 + $0x198] sm:$0xff]
  %v72 = vld [vmem:[%s0 + $0x1a0] sm:$0xff]
  %v73 = vld [vmem:[%s0 + $0x1a8] sm:$0xff]
  %v74 = vld [vmem:[%s0 + $0x1b0] sm:$0xff]
  %v75 = vld [vmem:[%s0 + $0x1b8] sm:$0xff]
  %v76 = vld [vmem:[%s0 + $0x1c0] sm:$0xff]
  %v77 = vld [vmem:[%s0 + $0x1c8] sm:$0xff]
  %v78 = vld [vmem:[%s0 + $0x1d0] sm:$0xff]
  %v79 = vld [vmem:[%s0 + $0x1d8] sm:$0xff]
  %v80 = vld [vmem:[%s0 + $0x1e0] sm:$0xff]
  %v81 = vld [vmem:[%s0 + $0x1e8] sm:$0xff]
  %v82 = vld [vmem:[%s0 + $0x1f0] sm:$0xff]
  %v83 = vld [vmem:[%s1] sm:$0xff]
  %v84 = vld [vmem:[%s1 + $0x8] sm:$0xff]
  %v85 = vld [vmem:[%s1 + $0x10] sm:$0xff]
  %v86 = vld [vmem:[%s1 + $0x18] sm:$0xff]
  %v87 = vld [vmem:[%s2] sm:$0x1]
  %v89 = vlaneseq
  %v90 = vshrl.u32 %v89, 7
  %v91 = vsub.s32 0, %v90
  %v92 = vrot.slane %v87, %v91
  %vm94 = vcmask 261120
  %v96 = vsel %vm94, %v20, 0
  %v99 = vsel %vm94, %v21, 0
  %v102 = vsel %vm94, %v22, 0
  %v105 = vsel %vm94, %v23, 0
  %v108 = vsel %vm94, %v24, 0
  %v111 = vsel %vm94, %v25, 0
  %v114 = vsel %vm94, %v26, 0
  %v117 = vsel %vm94, %v27, 0
  %v120 = vsel %vm94, %v28, 0
  %v123 = vsel %vm94, %v29, 0
  %v126 = vsel %vm94, %v30, 0
  %v129 = vsel %vm94, %v31, 0
  %v132 = vsel %vm94, %v32, 0
  %v135 = vsel %vm94, %v33, 0
  %v138 = vsel %vm94, %v34, 0
  %v141 = vsel %vm94, %v35, 0
  %v144 = vsel %vm94, %v36, 0
  %v147 = vsel %vm94, %v37, 0
  %v150 = vsel %vm94, %v38, 0
  %v153 = vsel %vm94, %v39, 0
  %v156 = vsel %vm94, %v40, 0
  %v159 = vsel %vm94, %v41, 0
  %v162 = vsel %vm94, %v42, 0
  %v165 = vsel %vm94, %v43, 0
  %v168 = vsel %vm94, %v44, 0
  %v171 = vsel %vm94, %v45, 0
  %v174 = vsel %vm94, %v46, 0
  %v177 = vsel %vm94, %v47, 0
  %v180 = vsel %vm94, %v48, 0
  %v183 = vsel %vm94, %v49, 0
  %v186 = vsel %vm94, %v50, 0
  %v189 = vsel %vm94, %v51, 0
  %v192 = vsel %vm94, %v52, 0
  %v195 = vsel %vm94, %v53, 0
  %v198 = vsel %vm94, %v54, 0
  %v201 = vsel %vm94, %v55, 0
  %v204 = vsel %vm94, %v56, 0
  %v207 = vsel %vm94, %v57, 0
  %v210 = vsel %vm94, %v58, 0
  %v213 = vsel %vm94, %v59, 0
  %v216 = vsel %vm94, %v60, 0
  %v219 = vsel %vm94, %v61, 0
  %v222 = vsel %vm94, %v62, 0
  %v225 = vsel %vm94, %v63, 0
  %v228 = vsel %vm94, %v64, 0
  %v231 = vsel %vm94, %v65, 0
  %v234 = vsel %vm94, %v66, 0
  %v237 = vsel %vm94, %v67, 0
  %v240 = vsel %vm94, %v68, 0
  %v243 = vsel %vm94, %v69, 0
  %v246 = vsel %vm94, %v70, 0
  %v249 = vsel %vm94, %v71, 0
  %v252 = vsel %vm94, %v72, 0
  %v255 = vsel %vm94, %v73, 0
  %v258 = vsel %vm94, %v74, 0
  %v261 = vsel %vm94, %v75, 0
  %v264 = vsel %vm94, %v76, 0
  %v267 = vsel %vm94, %v77, 0
  %v270 = vsel %vm94, %v78, 0
  %v273 = vsel %vm94, %v79, 0
  %v276 = vsel %vm94, %v80, 0
  %v279 = vsel %vm94, %v81, 0
  %v282 = vsel %vm94, %v82, 0
  %284 = vmatprep.subr.mxu0 0.0
  %285 = vmatpush1.msra.mxu0 0.0
  %286 = vmatprep.subr.mxu0 0.0
  %287 = vmatpush1.msra.mxu0 0.0
  %288 = vmatprep.subr.mxu0 0.0
  %289 = vmatpush1.msra.mxu0 0.0
  %290 = vmatprep.subr.mxu0 0.0
  %291 = vmatpush1.msra.mxu0 0.0
  %292 = vmatprep.subr.mxu0 0.0
  %293 = vmatpush1.msra.mxu0 0.0
  %294 = vmatprep.subr.mxu0 0.0
  %295 = vmatpush1.msra.mxu0 0.0
  %296 = vmatprep.subr.mxu0 0.0
  %297 = vmatpush1.msra.mxu0 0.0
  %298 = vmatprep.subr.mxu0 0.0
  %299 = vmatpush1.msra.mxu0 0.0
  %300 = vmatprep.subr.mxu0 0.0
  %301 = vmatpush1.msra.mxu0 0.0
  %302 = vmatprep.subr.mxu0 0.0
  %303 = vmatpush1.msra.mxu0 0.0
  %304 = vmatprep.subr.mxu0 0.0
  %305 = vmatpush1.msra.mxu0 0.0
  %306 = vmatprep.subr.mxu0 0.0
  %307 = vmatpush1.msra.mxu0 0.0
  %308 = vmatprep.subr.mxu0 0.0
  %309 = vmatpush1.msra.mxu0 %v86
  %310 = vmatprep.subr.mxu0 0.0
  %311 = vmatpush1.msra.mxu0 %v85
  %312 = vmatprep.subr.mxu0 0.0
  %313 = vmatpush1.msra.mxu0 %v84
  %314 = vmatprep.subr.mxu0 0.0
  %315 = vmatpush1.msra.mxu0 %v83
  %316 = vmatprep.subr.mxu0 0.0
  %317 = vmatpush2.msra.mxu0 0.0
  %318 = vmatprep.subr.mxu0 0.0
  %319 = vmatpush2.msra.mxu0 0.0
  %320 = vmatprep.subr.mxu0 0.0
  %321 = vmatpush2.msra.mxu0 0.0
  %322 = vmatprep.subr.mxu0 0.0
  %323 = vmatpush2.msra.mxu0 0.0
  %324 = vmatprep.subr.mxu0 0.0
  %325 = vmatpush2.msra.mxu0 0.0
  %326 = vmatprep.subr.mxu0 0.0
  %327 = vmatpush2.msra.mxu0 0.0
  %328 = vmatprep.subr.mxu0 0.0
  %329 = vmatpush2.msra.mxu0 0.0
  %330 = vmatprep.subr.mxu0 0.0
  %331 = vmatpush2.msra.mxu0 0.0
  %332 = vmatprep.subr.mxu0 0.0
  %333 = vmatpush2.msra.mxu0 0.0
  %334 = vmatprep.subr.mxu0 0.0
  %335 = vmatpush2.msra.mxu0 0.0
  %336 = vmatprep.subr.mxu0 0.0
  %337 = vmatpush2.msra.mxu0 0.0
  %338 = vmatprep.subr.mxu0 0.0
  %339 = vmatpush2.msra.mxu0 0.0
  %340 = vmatprep.subr.mxu0 0.0
  %341 = vmatpush2.msra.mxu0 0.0
  %342 = vmatprep.subr.mxu0 0.0
  %343 = vmatpush2.msra.mxu0 0.0
  %344 = vmatprep.subr.mxu0 0.0
  %345 = vmatpush2.msra.mxu0 0.0
  %346 = vmatprep.subr.mxu0 0.0
  %347 = vmatpush2.msra.mxu0 0.0
  %348 = vmatprep.mubr.f32.mxu0 0.0
  %349 = vmatmul.mubr.f32.gmra.mxu0 %v96
  %v350 = vpop.f32.mrf.mxu0
  %v351 = vadd.f32 %v92, %v350
  %v352 = vpop.f32.mrf.mxu0
  %353 = vmatprep.mubr.f32.mxu0 0.0
  %354 = vmatmul.mubr.f32.gmra.mxu0 %v99
  %v355 = vpop.f32.mrf.mxu0
  %v356 = vadd.f32 %v92, %v355
  %v357 = vpop.f32.mrf.mxu0
  %358 = vmatprep.mubr.f32.mxu0 0.0
  %359 = vmatmul.mubr.f32.gmra.mxu0 %v102
  %v360 = vpop.f32.mrf.mxu0
  %v361 = vadd.f32 %v92, %v360
  %v362 = vpop.f32.mrf.mxu0
  %363 = vmatprep.mubr.f32.mxu0 0.0
  %364 = vmatmul.mubr.f32.gmra.mxu0 %v105
  %v365 = vpop.f32.mrf.mxu0
  %v366 = vadd.f32 %v92, %v365
  %v367 = vpop.f32.mrf.mxu0
  %368 = vmatprep.mubr.f32.mxu0 0.0
  %369 = vmatmul.mubr.f32.gmra.mxu0 %v108
  %v370 = vpop.f32.mrf.mxu0
  %v371 = vadd.f32 %v92, %v370
  %v372 = vpop.f32.mrf.mxu0
  %373 = vmatprep.mubr.f32.mxu0 0.0
  %374 = vmatmul.mubr.f32.gmra.mxu0 %v111
  %v375 = vpop.f32.mrf.mxu0
  %v376 = vadd.f32 %v92, %v375
  %v377 = vpop.f32.mrf.mxu0
  %378 = vmatprep.mubr.f32.mxu0 0.0
  %379 = vmatmul.mubr.f32.gmra.mxu0 %v114
  %v380 = vpop.f32.mrf.mxu0
  %v381 = vadd.f32 %v92, %v380
  %v382 = vpop.f32.mrf.mxu0
  %383 = vmatprep.mubr.f32.mxu0 0.0
  %384 = vmatmul.mubr.f32.gmra.mxu0 %v117
  %v385 = vpop.f32.mrf.mxu0
  %v386 = vadd.f32 %v92, %v385
  %v387 = vpop.f32.mrf.mxu0
  %388 = vmatprep.mubr.f32.mxu0 0.0
  %389 = vmatmul.mubr.f32.gmra.mxu0 %v120
  %v390 = vpop.f32.mrf.mxu0
  %v391 = vadd.f32 %v92, %v390
  %v392 = vpop.f32.mrf.mxu0
  %393 = vmatprep.mubr.f32.mxu0 0.0
  %394 = vmatmul.mubr.f32.gmra.mxu0 %v123
  %v395 = vpop.f32.mrf.mxu0
  %v396 = vadd.f32 %v92, %v395
  %v397 = vpop.f32.mrf.mxu0
  %398 = vmatprep.mubr.f32.mxu0 0.0
  %399 = vmatmul.mubr.f32.gmra.mxu0 %v126
  %v400 = vpop.f32.mrf.mxu0
  %v401 = vadd.f32 %v92, %v400
  %v402 = vpop.f32.mrf.mxu0
  %403 = vmatprep.mubr.f32.mxu0 0.0
  %404 = vmatmul.mubr.f32.gmra.mxu0 %v129
  %v405 = vpop.f32.mrf.mxu0
  %v406 = vadd.f32 %v92, %v405
  %v407 = vpop.f32.mrf.mxu0
  %408 = vmatprep.mubr.f32.mxu0 0.0
  %409 = vmatmul.mubr.f32.gmra.mxu0 %v132
  %v410 = vpop.f32.mrf.mxu0
  %v411 = vadd.f32 %v92, %v410
  %v412 = vpop.f32.mrf.mxu0
  %413 = vmatprep.mubr.f32.mxu0 0.0
  %414 = vmatmul.mubr.f32.gmra.mxu0 %v135
  %v415 = vpop.f32.mrf.mxu0
  %v416 = vadd.f32 %v92, %v415
  %v417 = vpop.f32.mrf.mxu0
  %418 = vmatprep.mubr.f32.mxu0 0.0
  %419 = vmatmul.mubr.f32.gmra.mxu0 %v138
  %v420 = vpop.f32.mrf.mxu0
  %v421 = vadd.f32 %v92, %v420
  %v422 = vpop.f32.mrf.mxu0
  %423 = vmatprep.mubr.f32.mxu0 0.0
  %424 = vmatmul.mubr.f32.gmra.mxu0 %v141
  %v425 = vpop.f32.mrf.mxu0
  %v426 = vadd.f32 %v92, %v425
  %v427 = vpop.f32.mrf.mxu0
  %428 = vmatprep.mubr.f32.mxu0 0.0
  %429 = vmatmul.mubr.f32.gmra.mxu0 %v144
  %v430 = vpop.f32.mrf.mxu0
  %v431 = vadd.f32 %v92, %v430
  %v432 = vpop.f32.mrf.mxu0
  %433 = vmatprep.mubr.f32.mxu0 0.0
  %434 = vmatmul.mubr.f32.gmra.mxu0 %v147
  %v435 = vpop.f32.mrf.mxu0
  %v436 = vadd.f32 %v92, %v435
  %v437 = vpop.f32.mrf.mxu0
  %438 = vmatprep.mubr.f32.mxu0 0.0
  %439 = vmatmul.mubr.f32.gmra.mxu0 %v150
  %v440 = vpop.f32.mrf.mxu0
  %v441 = vadd.f32 %v92, %v440
  %v442 = vpop.f32.mrf.mxu0
  %443 = vmatprep.mubr.f32.mxu0 0.0
  %444 = vmatmul.mubr.f32.gmra.mxu0 %v153
  %v445 = vpop.f32.mrf.mxu0
  %v446 = vadd.f32 %v92, %v445
  %v447 = vpop.f32.mrf.mxu0
  %448 = vmatprep.mubr.f32.mxu0 0.0
  %449 = vmatmul.mubr.f32.gmra.mxu0 %v156
  %v450 = vpop.f32.mrf.mxu0
  %v451 = vadd.f32 %v92, %v450
  %v452 = vpop.f32.mrf.mxu0
  %453 = vmatprep.mubr.f32.mxu0 0.0
  %454 = vmatmul.mubr.f32.gmra.mxu0 %v159
  %v455 = vpop.f32.mrf.mxu0
  %v456 = vadd.f32 %v92, %v455
  %v457 = vpop.f32.mrf.mxu0
  %458 = vmatprep.mubr.f32.mxu0 0.0
  %459 = vmatmul.mubr.f32.gmra.mxu0 %v162
  %v460 = vpop.f32.mrf.mxu0
  %v461 = vadd.f32 %v92, %v460
  %v462 = vpop.f32.mrf.mxu0
  %463 = vmatprep.mubr.f32.mxu0 0.0
  %464 = vmatmul.mubr.f32.gmra.mxu0 %v165
  %v465 = vpop.f32.mrf.mxu0
  %v466 = vadd.f32 %v92, %v465
  %v467 = vpop.f32.mrf.mxu0
  %468 = vmatprep.mubr.f32.mxu0 0.0
  %469 = vmatmul.mubr.f32.gmra.mxu0 %v168
  %v470 = vpop.f32.mrf.mxu0
  %v471 = vadd.f32 %v92, %v470
  %v472 = vpop.f32.mrf.mxu0
  %473 = vmatprep.mubr.f32.mxu0 0.0
  %474 = vmatmul.mubr.f32.gmra.mxu0 %v171
  %v475 = vpop.f32.mrf.mxu0
  %v476 = vadd.f32 %v92, %v475
  %v477 = vpop.f32.mrf.mxu0
  %478 = vmatprep.mubr.f32.mxu0 0.0
  %479 = vmatmul.mubr.f32.gmra.mxu0 %v174
  %v480 = vpop.f32.mrf.mxu0
  %v481 = vadd.f32 %v92, %v480
  %v482 = vpop.f32.mrf.mxu0
  %483 = vmatprep.mubr.f32.mxu0 0.0
  %484 = vmatmul.mubr.f32.gmra.mxu0 %v177
  %v485 = vpop.f32.mrf.mxu0
  %v486 = vadd.f32 %v92, %v485
  %v487 = vpop.f32.mrf.mxu0
  %488 = vmatprep.mubr.f32.mxu0 0.0
  %489 = vmatmul.mubr.f32.gmra.mxu0 %v180
  %v490 = vpop.f32.mrf.mxu0
  %v491 = vadd.f32 %v92, %v490
  %v492 = vpop.f32.mrf.mxu0
  %493 = vmatprep.mubr.f32.mxu0 0.0
  %494 = vmatmul.mubr.f32.gmra.mxu0 %v183
  %v495 = vpop.f32.mrf.mxu0
  %v496 = vadd.f32 %v92, %v495
  %v497 = vpop.f32.mrf.mxu0
  %498 = vmatprep.mubr.f32.mxu0 0.0
  %499 = vmatmul.mubr.f32.gmra.mxu0 %v186
  %v500 = vpop.f32.mrf.mxu0
  %v501 = vadd.f32 %v92, %v500
  %v502 = vpop.f32.mrf.mxu0
  %503 = vmatprep.mubr.f32.mxu0 0.0
  %504 = vmatmul.mubr.f32.gmra.mxu0 %v189
  %v505 = vpop.f32.mrf.mxu0
  %v506 = vadd.f32 %v92, %v505
  %v507 = vpop.f32.mrf.mxu0
  %508 = vmatprep.mubr.f32.mxu0 0.0
  %509 = vmatmul.mubr.f32.gmra.mxu0 %v192
  %v510 = vpop.f32.mrf.mxu0
  %v511 = vadd.f32 %v92, %v510
  %v512 = vpop.f32.mrf.mxu0
  %513 = vmatprep.mubr.f32.mxu0 0.0
  %514 = vmatmul.mubr.f32.gmra.mxu0 %v195
  %v515 = vpop.f32.mrf.mxu0
  %v516 = vadd.f32 %v92, %v515
  %v517 = vpop.f32.mrf.mxu0
  %518 = vmatprep.mubr.f32.mxu0 0.0
  %519 = vmatmul.mubr.f32.gmra.mxu0 %v198
  %v520 = vpop.f32.mrf.mxu0
  %v521 = vadd.f32 %v92, %v520
  %v522 = vpop.f32.mrf.mxu0
  %523 = vmatprep.mubr.f32.mxu0 0.0
  %524 = vmatmul.mubr.f32.gmra.mxu0 %v201
  %v525 = vpop.f32.mrf.mxu0
  %v526 = vadd.f32 %v92, %v525
  %v527 = vpop.f32.mrf.mxu0
  %528 = vmatprep.mubr.f32.mxu0 0.0
  %529 = vmatmul.mubr.f32.gmra.mxu0 %v204
  %v530 = vpop.f32.mrf.mxu0
  %v531 = vadd.f32 %v92, %v530
  %v532 = vpop.f32.mrf.mxu0
  %533 = vmatprep.mubr.f32.mxu0 0.0
  %534 = vmatmul.mubr.f32.gmra.mxu0 %v207
  %v535 = vpop.f32.mrf.mxu0
  %v536 = vadd.f32 %v92, %v535
  %v537 = vpop.f32.mrf.mxu0
  %538 = vmatprep.mubr.f32.mxu0 0.0
  %539 = vmatmul.mubr.f32.gmra.mxu0 %v210
  %v540 = vpop.f32.mrf.mxu0
  %v541 = vadd.f32 %v92, %v540
  %v542 = vpop.f32.mrf.mxu0
  %543 = vmatprep.mubr.f32.mxu0 0.0
  %544 = vmatmul.mubr.f32.gmra.mxu0 %v213
  %v545 = vpop.f32.mrf.mxu0
  %v546 = vadd.f32 %v92, %v545
  %v547 = vpop.f32.mrf.mxu0
  %548 = vmatprep.mubr.f32.mxu0 0.0
  %549 = vmatmul.mubr.f32.gmra.mxu0 %v216
  %v550 = vpop.f32.mrf.mxu0
  %v551 = vadd.f32 %v92, %v550
  %v552 = vpop.f32.mrf.mxu0
  %553 = vmatprep.mubr.f32.mxu0 0.0
  %554 = vmatmul.mubr.f32.gmra.mxu0 %v219
  %v555 = vpop.f32.mrf.mxu0
  %v556 = vadd.f32 %v92, %v555
  %v557 = vpop.f32.mrf.mxu0
  %558 = vmatprep.mubr.f32.mxu0 0.0
  %559 = vmatmul.mubr.f32.gmra.mxu0 %v222
  %v560 = vpop.f32.mrf.mxu0
  %v561 = vadd.f32 %v92, %v560
  %v562 = vpop.f32.mrf.mxu0
  %563 = vmatprep.mubr.f32.mxu0 0.0
  %564 = vmatmul.mubr.f32.gmra.mxu0 %v225
  %v565 = vpop.f32.mrf.mxu0
  %v566 = vadd.f32 %v92, %v565
  %v567 = vpop.f32.mrf.mxu0
  %568 = vmatprep.mubr.f32.mxu0 0.0
  %569 = vmatmul.mubr.f32.gmra.mxu0 %v228
  %v570 = vpop.f32.mrf.mxu0
  %v571 = vadd.f32 %v92, %v570
  %v572 = vpop.f32.mrf.mxu0
  %573 = vmatprep.mubr.f32.mxu0 0.0
  %574 = vmatmul.mubr.f32.gmra.mxu0 %v231
  %v575 = vpop.f32.mrf.mxu0
  %v576 = vadd.f32 %v92, %v575
  %v577 = vpop.f32.mrf.mxu0
  %578 = vmatprep.mubr.f32.mxu0 0.0
  %579 = vmatmul.mubr.f32.gmra.mxu0 %v234
  %v580 = vpop.f32.mrf.mxu0
  %v581 = vadd.f32 %v92, %v580
  %v582 = vpop.f32.mrf.mxu0
  %583 = vmatprep.mubr.f32.mxu0 0.0
  %584 = vmatmul.mubr.f32.gmra.mxu0 %v237
  %v585 = vpop.f32.mrf.mxu0
  %v586 = vadd.f32 %v92, %v585
  %v587 = vpop.f32.mrf.mxu0
  %588 = vmatprep.mubr.f32.mxu0 0.0
  %589 = vmatmul.mubr.f32.gmra.mxu0 %v240
  %v590 = vpop.f32.mrf.mxu0
  %v591 = vadd.f32 %v92, %v590
  %v592 = vpop.f32.mrf.mxu0
  %593 = vmatprep.mubr.f32.mxu0 0.0
  %594 = vmatmul.mubr.f32.gmra.mxu0 %v243
  %v595 = vpop.f32.mrf.mxu0
  %v596 = vadd.f32 %v92, %v595
  %v597 = vpop.f32.mrf.mxu0
  %598 = vmatprep.mubr.f32.mxu0 0.0
  %599 = vmatmul.mubr.f32.gmra.mxu0 %v246
  %v600 = vpop.f32.mrf.mxu0
  %v601 = vadd.f32 %v92, %v600
  %v602 = vpop.f32.mrf.mxu0
  %603 = vmatprep.mubr.f32.mxu0 0.0
  %604 = vmatmul.mubr.f32.gmra.mxu0 %v249
  %v605 = vpop.f32.mrf.mxu0
  %v606 = vadd.f32 %v92, %v605
  %v607 = vpop.f32.mrf.mxu0
  %608 = vmatprep.mubr.f32.mxu0 0.0
  %609 = vmatmul.mubr.f32.gmra.mxu0 %v252
  %v610 = vpop.f32.mrf.mxu0
  %v611 = vadd.f32 %v92, %v610
  %v612 = vpop.f32.mrf.mxu0
  %613 = vmatprep.mubr.f32.mxu0 0.0
  %614 = vmatmul.mubr.f32.gmra.mxu0 %v255
  %v615 = vpop.f32.mrf.mxu0
  %v616 = vadd.f32 %v92, %v615
  %v617 = vpop.f32.mrf.mxu0
  %618 = vmatprep.mubr.f32.mxu0 0.0
  %619 = vmatmul.mubr.f32.gmra.mxu0 %v258
  %v620 = vpop.f32.mrf.mxu0
  %v621 = vadd.f32 %v92, %v620
  %v622 = vpop.f32.mrf.mxu0
  %623 = vmatprep.mubr.f32.mxu0 0.0
  %624 = vmatmul.mubr.f32.gmra.mxu0 %v261
  %v625 = vpop.f32.mrf.mxu0
  %v626 = vadd.f32 %v92, %v625
  %v627 = vpop.f32.mrf.mxu0
  %628 = vmatprep.mubr.f32.mxu0 0.0
  %629 = vmatmul.mubr.f32.gmra.mxu0 %v264
  %v630 = vpop.f32.mrf.mxu0
  %v631 = vadd.f32 %v92, %v630
  %v632 = vpop.f32.mrf.mxu0
  %633 = vmatprep.mubr.f32.mxu0 0.0
  %634 = vmatmul.mubr.f32.gmra.mxu0 %v267
  %v635 = vpop.f32.mrf.mxu0
  %v636 = vadd.f32 %v92, %v635
  %v637 = vpop.f32.mrf.mxu0
  %638 = vmatprep.mubr.f32.mxu0 0.0
  %639 = vmatmul.mubr.f32.gmra.mxu0 %v270
  %v640 = vpop.f32.mrf.mxu0
  %v641 = vadd.f32 %v92, %v640
  %v642 = vpop.f32.mrf.mxu0
  %643 = vmatprep.mubr.f32.mxu0 0.0
  %644 = vmatmul.mubr.f32.gmra.mxu0 %v273
  %v645 = vpop.f32.mrf.mxu0
  %v646 = vadd.f32 %v92, %v645
  %v647 = vpop.f32.mrf.mxu0
  %648 = vmatprep.mubr.f32.mxu0 0.0
  %649 = vmatmul.mubr.f32.gmra.mxu0 %v276
  %v650 = vpop.f32.mrf.mxu0
  %v651 = vadd.f32 %v92, %v650
  %v652 = vpop.f32.mrf.mxu0
  %653 = vmatprep.mubr.f32.mxu0 0.0
  %654 = vmatmul.mubr.f32.gmra.mxu0 %v279
  %v655 = vpop.f32.mrf.mxu0
  %v656 = vadd.f32 %v92, %v655
  %v657 = vpop.f32.mrf.mxu0
  %658 = vmatprep.mubr.f32.mxu0 0.0
  %659 = vmatmul.mubr.f32.gmra.mxu0 %v282
  %v660 = vpop.f32.mrf.mxu0
  %v661 = vadd.f32 %v92, %v660
  %v662 = vpop.f32.mrf.mxu0
  %663 = vdwg.mxu0
  %v664 = vmax.f32 %v351, 0.0
  %v665 = vmax.f32 %v356, 0.0
  %v666 = vmax.f32 %v361, 0.0
  %v667 = vmax.f32 %v366, 0.0
  %v668 = vmax.f32 %v371, 0.0
  %v669 = vmax.f32 %v376, 0.0
  %v670 = vmax.f32 %v381, 0.0
  %v671 = vmax.f32 %v386, 0.0
  %v672 = vmax.f32 %v391, 0.0
  %v673 = vmax.f32 %v396, 0.0
  %v674 = vmax.f32 %v401, 0.0
  %v675 = vmax.f32 %v406, 0.0
  %v676 = vmax.f32 %v411, 0.0
  %v677 = vmax.f32 %v416, 0.0
  %v678 = vmax.f32 %v421, 0.0
  %v679 = vmax.f32 %v426, 0.0
  %v680 = vmax.f32 %v431, 0.0
  %v681 = vmax.f32 %v436, 0.0
  %v682 = vmax.f32 %v441, 0.0
  %v683 = vmax.f32 %v446, 0.0
  %v684 = vmax.f32 %v451, 0.0
  %v685 = vmax.f32 %v456, 0.0
  %v686 = vmax.f32 %v461, 0.0
  %v687 = vmax.f32 %v466, 0.0
  %v688 = vmax.f32 %v471, 0.0
  %v689 = vmax.f32 %v476, 0.0
  %v690 = vmax.f32 %v481, 0.0
  %v691 = vmax.f32 %v486, 0.0
  %v692 = vmax.f32 %v491, 0.0
  %v693 = vmax.f32 %v496, 0.0
  %v694 = vmax.f32 %v501, 0.0
  %v695 = vmax.f32 %v506, 0.0
  %v696 = vmax.f32 %v511, 0.0
  %v697 = vmax.f32 %v516, 0.0
  %v698 = vmax.f32 %v521, 0.0
  %v699 = vmax.f32 %v526, 0.0
  %v700 = vmax.f32 %v531, 0.0
  %v701 = vmax.f32 %v536, 0.0
  %v702 = vmax.f32 %v541, 0.0
  %v703 = vmax.f32 %v546, 0.0
  %v704 = vmax.f32 %v551, 0.0
  %v705 = vmax.f32 %v556, 0.0
  %v706 = vmax.f32 %v561, 0.0
  %v707 = vmax.f32 %v566, 0.0
  %v708 = vmax.f32 %v571, 0.0
  %v709 = vmax.f32 %v576, 0.0
  %v710 = vmax.f32 %v581, 0.0
  %v711 = vmax.f32 %v586, 0.0
  %v712 = vmax.f32 %v591, 0.0
  %v713 = vmax.f32 %v596, 0.0
  %v714 = vmax.f32 %v601, 0.0
  %v715 = vmax.f32 %v606, 0.0
  %v716 = vmax.f32 %v611, 0.0
  %v717 = vmax.f32 %v616, 0.0
  %v718 = vmax.f32 %v621, 0.0
  %v719 = vmax.f32 %v626, 0.0
  %v720 = vmax.f32 %v631, 0.0
  %v721 = vmax.f32 %v636, 0.0
  %v722 = vmax.f32 %v641, 0.0
  %v723 = vmax.f32 %v646, 0.0
  %v724 = vmax.f32 %v651, 0.0
  %v725 = vmax.f32 %v656, 0.0
  %v726 = vmax.f32 %v661, 0.0
  %v727 = vld [vmem:[%s3] sm:$0xff]
  %v728 = vld [vmem:[%s3 + $0x8] sm:$0xff]
  %v729 = vld [vmem:[%s3 + $0x10] sm:$0xff]
  %v730 = vld [vmem:[%s3 + $0x18] sm:$0xff]
  %v731 = vld [vmem:[%s3 + $0x20] sm:$0xff]
  %v732 = vld [vmem:[%s3 + $0x28] sm:$0xff]
  %v733 = vld [vmem:[%s3 + $0x30] sm:$0xff]
  %v734 = vld [vmem:[%s3 + $0x38] sm:$0xff]
  %v735 = vld [vmem:[%s4] sm:$0x1]
  %v737 = vlaneseq
  %v738 = vshrl.u32 %v737, 7
  %v739 = vsub.s32 0, %v738
  %v740 = vrot.slane %v735, %v739
  %vm742 = vcmask 523264
  %v744 = vsel %vm742, %v664, 0
  %v747 = vsel %vm742, %v665, 0
  %v750 = vsel %vm742, %v666, 0
  %v753 = vsel %vm742, %v667, 0
  %v756 = vsel %vm742, %v668, 0
  %v759 = vsel %vm742, %v669, 0
  %v762 = vsel %vm742, %v670, 0
  %v765 = vsel %vm742, %v671, 0
  %v768 = vsel %vm742, %v672, 0
  %v771 = vsel %vm742, %v673, 0
  %v774 = vsel %vm742, %v674, 0
  %v777 = vsel %vm742, %v675, 0
  %v780 = vsel %vm742, %v676, 0
  %v783 = vsel %vm742, %v677, 0
  %v786 = vsel %vm742, %v678, 0
  %v789 = vsel %vm742, %v679, 0
  %v792 = vsel %vm742, %v680, 0
  %v795 = vsel %vm742, %v681, 0
  %v798 = vsel %vm742, %v682, 0
  %v801 = vsel %vm742, %v683, 0
  %v804 = vsel %vm742, %v684, 0
  %v807 = vsel %vm742, %v685, 0
  %v810 = vsel %vm742, %v686, 0
  %v813 = vsel %vm742, %v687, 0
  %v816 = vsel %vm742, %v688, 0
  %v819 = vsel %vm742, %v689, 0
  %v822 = vsel %vm742, %v690, 0
  %v825 = vsel %vm742, %v691, 0
  %v828 = vsel %vm742, %v692, 0
  %v831 = vsel %vm742, %v693, 0
  %v834 = vsel %vm742, %v694, 0
  %v837 = vsel %vm742, %v695, 0
  %v840 = vsel %vm742, %v696, 0
  %v843 = vsel %vm742, %v697, 0
  %v846 = vsel %vm742, %v698, 0
  %v849 = vsel %vm742, %v699, 0
  %v852 = vsel %vm742, %v700, 0
  %v855 = vsel %vm742, %v701, 0
  %v858 = vsel %vm742, %v702, 0
  %v861 = vsel %vm742, %v703, 0
  %v864 = vsel %vm742, %v704, 0
  %v867 = vsel %vm742, %v705, 0
  %v870 = vsel %vm742, %v706, 0
  %v873 = vsel %vm742, %v707, 0
  %v876 = vsel %vm742, %v708, 0
  %v879 = vsel %vm742, %v709, 0
  %v882 = vsel %vm742, %v710, 0
  %v885 = vsel %vm742, %v711, 0
  %v888 = vsel %vm742, %v712, 0
  %v891 = vsel %vm742, %v713, 0
  %v894 = vsel %vm742, %v714, 0
  %v897 = vsel %vm742, %v715, 0
  %v900 = vsel %vm742, %v716, 0
  %v903 = vsel %vm742, %v717, 0
  %v906 = vsel %vm742, %v718, 0
  %v909 = vsel %vm742, %v719, 0
  %v912 = vsel %vm742, %v720, 0
  %v915 = vsel %vm742, %v721, 0
  %v918 = vsel %vm742, %v722, 0
  %v921 = vsel %vm742, %v723, 0
  %v924 = vsel %vm742, %v724, 0
  %v927 = vsel %vm742, %v725, 0
  %v930 = vsel %vm742, %v726, 0
  %932 = vmatprep.subr.mxu0 0.0
  %933 = vmatpush1.msra.mxu0 0.0
  %934 = vmatprep.subr.mxu0 0.0
  %935 = vmatpush1.msra.mxu0 0.0
  %936 = vmatprep.subr.mxu0 0.0
  %937 = vmatpush1.msra.mxu0 0.0
  %938 = vmatprep.subr.mxu0 0.0
  %939 = vmatpush1.msra.mxu0 0.0
  %940 = vmatprep.subr.mxu0 0.0
  %941 = vmatpush1.msra.mxu0 0.0
  %942 = vmatprep.subr.mxu0 0.0
  %943 = vmatpush1.msra.mxu0 0.0
  %944 = vmatprep.subr.mxu0 0.0
  %945 = vmatpush1.msra.mxu0 0.0
  %946 = vmatprep.subr.mxu0 0.0
  %947 = vmatpush1.msra.mxu0 0.0
  %948 = vmatprep.subr.mxu0 0.0
  %949 = vmatpush1.msra.mxu0 %v734
  %950 = vmatprep.subr.mxu0 0.0
  %951 = vmatpush1.msra.mxu0 %v733
  %952 = vmatprep.subr.mxu0 0.0
  %953 = vmatpush1.msra.mxu0 %v732
  %954 = vmatprep.subr.mxu0 0.0
  %955 = vmatpush1.msra.mxu0 %v731
  %956 = vmatprep.subr.mxu0 0.0
  %957 = vmatpush1.msra.mxu0 %v730
  %958 = vmatprep.subr.mxu0 0.0
  %959 = vmatpush1.msra.mxu0 %v729
  %960 = vmatprep.subr.mxu0 0.0
  %961 = vmatpush1.msra.mxu0 %v728
  %962 = vmatprep.subr.mxu0 0.0
  %963 = vmatpush1.msra.mxu0 %v727
  %964 = vmatprep.subr.mxu0 0.0
  %965 = vmatpush2.msra.mxu0 0.0
  %966 = vmatprep.subr.mxu0 0.0
  %967 = vmatpush2.msra.mxu0 0.0
  %968 = vmatprep.subr.mxu0 0.0
  %969 = vmatpush2.msra.mxu0 0.0
  %970 = vmatprep.subr.mxu0 0.0
  %971 = vmatpush2.msra.mxu0 0.0
  %972 = vmatprep.subr.mxu0 0.0
  %973 = vmatpush2.msra.mxu0 0.0
  %974 = vmatprep.subr.mxu0 0.0
  %975 = vmatpush2.msra.mxu0 0.0
  %976 = vmatprep.subr.mxu0 0.0
  %977 = vmatpush2.msra.mxu0 0.0
  %978 = vmatprep.subr.mxu0 0.0
  %979 = vmatpush2.msra.mxu0 0.0
  %980 = vmatprep.subr.mxu0 0.0
  %981 = vmatpush2.msra.mxu0 0.0
  %982 = vmatprep.subr.mxu0 0.0
  %983 = vmatpush2.msra.mxu0 0.0
  %984 = vmatprep.subr.mxu0 0.0
  %985 = vmatpush2.msra.mxu0 0.0
  %986 = vmatprep.subr.mxu0 0.0
  %987 = vmatpush2.msra.mxu0 0.0
  %988 = vmatprep.subr.mxu0 0.0
  %989 = vmatpush2.msra.mxu0 0.0
  %990 = vmatprep.subr.mxu0 0.0
  %991 = vmatpush2.msra.mxu0 0.0
  %992 = vmatprep.subr.mxu0 0.0
  %993 = vmatpush2.msra.mxu0 0.0
  %994 = vmatprep.subr.mxu0 0.0
  %995 = vmatpush2.msra.mxu0 0.0
  %996 = vmatprep.mubr.f32.mxu0 0.0
  %997 = vmatmul.mubr.f32.gmra.mxu0 %v744
  %v998 = vpop.f32.mrf.mxu0
  %v999 = vadd.f32 %v740, %v998
  %v1000 = vpop.f32.mrf.mxu0
  %1001 = vmatprep.mubr.f32.mxu0 0.0
  %1002 = vmatmul.mubr.f32.gmra.mxu0 %v747
  %v1003 = vpop.f32.mrf.mxu0
  %v1004 = vadd.f32 %v740, %v1003
  %v1005 = vpop.f32.mrf.mxu0
  %1006 = vmatprep.mubr.f32.mxu0 0.0
  %1007 = vmatmul.mubr.f32.gmra.mxu0 %v750
  %v1008 = vpop.f32.mrf.mxu0
  %v1009 = vadd.f32 %v740, %v1008
  %v1010 = vpop.f32.mrf.mxu0
  %1011 = vmatprep.mubr.f32.mxu0 0.0
  %1012 = vmatmul.mubr.f32.gmra.mxu0 %v753
  %v1013 = vpop.f32.mrf.mxu0
  %v1014 = vadd.f32 %v740, %v1013
  %v1015 = vpop.f32.mrf.mxu0
  %1016 = vmatprep.mubr.f32.mxu0 0.0
  %1017 = vmatmul.mubr.f32.gmra.mxu0 %v756
  %v1018 = vpop.f32.mrf.mxu0
  %v1019 = vadd.f32 %v740, %v1018
  %v1020 = vpop.f32.mrf.mxu0
  %1021 = vmatprep.mubr.f32.mxu0 0.0
  %1022 = vmatmul.mubr.f32.gmra.mxu0 %v759
  %v1023 = vpop.f32.mrf.mxu0
  %v1024 = vadd.f32 %v740, %v1023
  %v1025 = vpop.f32.mrf.mxu0
  %1026 = vmatprep.mubr.f32.mxu0 0.0
  %1027 = vmatmul.mubr.f32.gmra.mxu0 %v762
  %v1028 = vpop.f32.mrf.mxu0
  %v1029 = vadd.f32 %v740, %v1028
  %v1030 = vpop.f32.mrf.mxu0
  %1031 = vmatprep.mubr.f32.mxu0 0.0
  %1032 = vmatmul.mubr.f32.gmra.mxu0 %v765
  %v1033 = vpop.f32.mrf.mxu0
  %v1034 = vadd.f32 %v740, %v1033
  %v1035 = vpop.f32.mrf.mxu0
  %1036 = vmatprep.mubr.f32.mxu0 0.0
  %1037 = vmatmul.mubr.f32.gmra.mxu0 %v768
  %v1038 = vpop.f32.mrf.mxu0
  %v1039 = vadd.f32 %v740, %v1038
  %v1040 = vpop.f32.mrf.mxu0
  %1041 = vmatprep.mubr.f32.mxu0 0.0
  %1042 = vmatmul.mubr.f32.gmra.mxu0 %v771
  %v1043 = vpop.f32.mrf.mxu0
  %v1044 = vadd.f32 %v740, %v1043
  %v1045 = vpop.f32.mrf.mxu0
  %1046 = vmatprep.mubr.f32.mxu0 0.0
  %1047 = vmatmul.mubr.f32.gmra.mxu0 %v774
  %v1048 = vpop.f32.mrf.mxu0
  %v1049 = vadd.f32 %v740, %v1048
  %v1050 = vpop.f32.mrf.mxu0
  %1051 = vmatprep.mubr.f32.mxu0 0.0
  %1052 = vmatmul.mubr.f32.gmra.mxu0 %v777
  %v1053 = vpop.f32.mrf.mxu0
  %v1054 = vadd.f32 %v740, %v1053
  %v1055 = vpop.f32.mrf.mxu0
  %1056 = vmatprep.mubr.f32.mxu0 0.0
  %1057 = vmatmul.mubr.f32.gmra.mxu0 %v780
  %v1058 = vpop.f32.mrf.mxu0
  %v1059 = vadd.f32 %v740, %v1058
  %v1060 = vpop.f32.mrf.mxu0
  %1061 = vmatprep.mubr.f32.mxu0 0.0
  %1062 = vmatmul.mubr.f32.gmra.mxu0 %v783
  %v1063 = vpop.f32.mrf.mxu0
  %v1064 = vadd.f32 %v740, %v1063
  %v1065 = vpop.f32.mrf.mxu0
  %1066 = vmatprep.mubr.f32.mxu0 0.0
  %1067 = vmatmul.mubr.f32.gmra.mxu0 %v786
  %v1068 = vpop.f32.mrf.mxu0
  %v1069 = vadd.f32 %v740, %v1068
  %v1070 = vpop.f32.mrf.mxu0
  %1071 = vmatprep.mubr.f32.mxu0 0.0
  %1072 = vmatmul.mubr.f32.gmra.mxu0 %v789
  %v1073 = vpop.f32.mrf.mxu0
  %v1074 = vadd.f32 %v740, %v1073
  %v1075 = vpop.f32.mrf.mxu0
  %1076 = vmatprep.mubr.f32.mxu0 0.0
  %1077 = vmatmul.mubr.f32.gmra.mxu0 %v792
  %v1078 = vpop.f32.mrf.mxu0
  %v1079 = vadd.f32 %v740, %v1078
  %v1080 = vpop.f32.mrf.mxu0
  %1081 = vmatprep.mubr.f32.mxu0 0.0
  %1082 = vmatmul.mubr.f32.gmra.mxu0 %v795
  %v1083 = vpop.f32.mrf.mxu0
  %v1084 = vadd.f32 %v740, %v1083
  %v1085 = vpop.f32.mrf.mxu0
  %1086 = vmatprep.mubr.f32.mxu0 0.0
  %1087 = vmatmul.mubr.f32.gmra.mxu0 %v798
  %v1088 = vpop.f32.mrf.mxu0
  %v1089 = vadd.f32 %v740, %v1088
  %v1090 = vpop.f32.mrf.mxu0
  %1091 = vmatprep.mubr.f32.mxu0 0.0
  %1092 = vmatmul.mubr.f32.gmra.mxu0 %v801
  %v1093 = vpop.f32.mrf.mxu0
  %v1094 = vadd.f32 %v740, %v1093
  %v1095 = vpop.f32.mrf.mxu0
  %1096 = vmatprep.mubr.f32.mxu0 0.0
  %1097 = vmatmul.mubr.f32.gmra.mxu0 %v804
  %v1098 = vpop.f32.mrf.mxu0
  %v1099 = vadd.f32 %v740, %v1098
  %v1100 = vpop.f32.mrf.mxu0
  %1101 = vmatprep.mubr.f32.mxu0 0.0
  %1102 = vmatmul.mubr.f32.gmra.mxu0 %v807
  %v1103 = vpop.f32.mrf.mxu0
  %v1104 = vadd.f32 %v740, %v1103
  %v1105 = vpop.f32.mrf.mxu0
  %1106 = vmatprep.mubr.f32.mxu0 0.0
  %1107 = vmatmul.mubr.f32.gmra.mxu0 %v810
  %v1108 = vpop.f32.mrf.mxu0
  %v1109 = vadd.f32 %v740, %v1108
  %v1110 = vpop.f32.mrf.mxu0
  %1111 = vmatprep.mubr.f32.mxu0 0.0
  %1112 = vmatmul.mubr.f32.gmra.mxu0 %v813
  %v1113 = vpop.f32.mrf.mxu0
  %v1114 = vadd.f32 %v740, %v1113
  %v1115 = vpop.f32.mrf.mxu0
  %1116 = vmatprep.mubr.f32.mxu0 0.0
  %1117 = vmatmul.mubr.f32.gmra.mxu0 %v816
  %v1118 = vpop.f32.mrf.mxu0
  %v1119 = vadd.f32 %v740, %v1118
  %v1120 = vpop.f32.mrf.mxu0
  %1121 = vmatprep.mubr.f32.mxu0 0.0
  %1122 = vmatmul.mubr.f32.gmra.mxu0 %v819
  %v1123 = vpop.f32.mrf.mxu0
  %v1124 = vadd.f32 %v740, %v1123
  %v1125 = vpop.f32.mrf.mxu0
  %1126 = vmatprep.mubr.f32.mxu0 0.0
  %1127 = vmatmul.mubr.f32.gmra.mxu0 %v822
  %v1128 = vpop.f32.mrf.mxu0
  %v1129 = vadd.f32 %v740, %v1128
  %v1130 = vpop.f32.mrf.mxu0
  %1131 = vmatprep.mubr.f32.mxu0 0.0
  %1132 = vmatmul.mubr.f32.gmra.mxu0 %v825
  %v1133 = vpop.f32.mrf.mxu0
  %v1134 = vadd.f32 %v740, %v1133
  %v1135 = vpop.f32.mrf.mxu0
  %1136 = vmatprep.mubr.f32.mxu0 0.0
  %1137 = vmatmul.mubr.f32.gmra.mxu0 %v828
  %v1138 = vpop.f32.mrf.mxu0
  %v1139 = vadd.f32 %v740, %v1138
  %v1140 = vpop.f32.mrf.mxu0
  %1141 = vmatprep.mubr.f32.mxu0 0.0
  %1142 = vmatmul.mubr.f32.gmra.mxu0 %v831
  %v1143 = vpop.f32.mrf.mxu0
  %v1144 = vadd.f32 %v740, %v1143
  %v1145 = vpop.f32.mrf.mxu0
  %1146 = vmatprep.mubr.f32.mxu0 0.0
  %1147 = vmatmul.mubr.f32.gmra.mxu0 %v834
  %v1148 = vpop.f32.mrf.mxu0
  %v1149 = vadd.f32 %v740, %v1148
  %v1150 = vpop.f32.mrf.mxu0
  %1151 = vmatprep.mubr.f32.mxu0 0.0
  %1152 = vmatmul.mubr.f32.gmra.mxu0 %v837
  %v1153 = vpop.f32.mrf.mxu0
  %v1154 = vadd.f32 %v740, %v1153
  %v1155 = vpop.f32.mrf.mxu0
  %1156 = vmatprep.mubr.f32.mxu0 0.0
  %1157 = vmatmul.mubr.f32.gmra.mxu0 %v840
  %v1158 = vpop.f32.mrf.mxu0
  %v1159 = vadd.f32 %v740, %v1158
  %v1160 = vpop.f32.mrf.mxu0
  %1161 = vmatprep.mubr.f32.mxu0 0.0
  %1162 = vmatmul.mubr.f32.gmra.mxu0 %v843
  %v1163 = vpop.f32.mrf.mxu0
  %v1164 = vadd.f32 %v740, %v1163
  %v1165 = vpop.f32.mrf.mxu0
  %1166 = vmatprep.mubr.f32.mxu0 0.0
  %1167 = vmatmul.mubr.f32.gmra.mxu0 %v846
  %v1168 = vpop.f32.mrf.mxu0
  %v1169 = vadd.f32 %v740, %v1168
  %v1170 = vpop.f32.mrf.mxu0
  %1171 = vmatprep.mubr.f32.mxu0 0.0
  %1172 = vmatmul.mubr.f32.gmra.mxu0 %v849
  %v1173 = vpop.f32.mrf.mxu0
  %v1174 = vadd.f32 %v740, %v1173
  %v1175 = vpop.f32.mrf.mxu0
  %1176 = vmatprep.mubr.f32.mxu0 0.0
  %1177 = vmatmul.mubr.f32.gmra.mxu0 %v852
  %v1178 = vpop.f32.mrf.mxu0
  %v1179 = vadd.f32 %v740, %v1178
  %v1180 = vpop.f32.mrf.mxu0
  %1181 = vmatprep.mubr.f32.mxu0 0.0
  %1182 = vmatmul.mubr.f32.gmra.mxu0 %v855
  %v1183 = vpop.f32.mrf.mxu0
  %v1184 = vadd.f32 %v740, %v1183
  %v1185 = vpop.f32.mrf.mxu0
  %1186 = vmatprep.mubr.f32.mxu0 0.0
  %1187 = vmatmul.mubr.f32.gmra.mxu0 %v858
  %v1188 = vpop.f32.mrf.mxu0
  %v1189 = vadd.f32 %v740, %v1188
  %v1190 = vpop.f32.mrf.mxu0
  %1191 = vmatprep.mubr.f32.mxu0 0.0
  %1192 = vmatmul.mubr.f32.gmra.mxu0 %v861
  %v1193 = vpop.f32.mrf.mxu0
  %v1194 = vadd.f32 %v740, %v1193
  %v1195 = vpop.f32.mrf.mxu0
  %1196 = vmatprep.mubr.f32.mxu0 0.0
  %1197 = vmatmul.mubr.f32.gmra.mxu0 %v864
  %v1198 = vpop.f32.mrf.mxu0
  %v1199 = vadd.f32 %v740, %v1198
  %v1200 = vpop.f32.mrf.mxu0
  %1201 = vmatprep.mubr.f32.mxu0 0.0
  %1202 = vmatmul.mubr.f32.gmra.mxu0 %v867
  %v1203 = vpop.f32.mrf.mxu0
  %v1204 = vadd.f32 %v740, %v1203
  %v1205 = vpop.f32.mrf.mxu0
  %1206 = vmatprep.mubr.f32.mxu0 0.0
  %1207 = vmatmul.mubr.f32.gmra.mxu0 %v870
  %v1208 = vpop.f32.mrf.mxu0
  %v1209 = vadd.f32 %v740, %v1208
  %v1210 = vpop.f32.mrf.mxu0
  %1211 = vmatprep.mubr.f32.mxu0 0.0
  %1212 = vmatmul.mubr.f32.gmra.mxu0 %v873
  %v1213 = vpop.f32.mrf.mxu0
  %v1214 = vadd.f32 %v740, %v1213
  %v1215 = vpop.f32.mrf.mxu0
  %1216 = vmatprep.mubr.f32.mxu0 0.0
  %1217 = vmatmul.mubr.f32.gmra.mxu0 %v876
  %v1218 = vpop.f32.mrf.mxu0
  %v1219 = vadd.f32 %v740, %v1218
  %v1220 = vpop.f32.mrf.mxu0
  %1221 = vmatprep.mubr.f32.mxu0 0.0
  %1222 = vmatmul.mubr.f32.gmra.mxu0 %v879
  %v1223 = vpop.f32.mrf.mxu0
  %v1224 = vadd.f32 %v740, %v1223
  %v1225 = vpop.f32.mrf.mxu0
  %1226 = vmatprep.mubr.f32.mxu0 0.0
  %1227 = vmatmul.mubr.f32.gmra.mxu0 %v882
  %v1228 = vpop.f32.mrf.mxu0
  %v1229 = vadd.f32 %v740, %v1228
  %v1230 = vpop.f32.mrf.mxu0
  %1231 = vmatprep.mubr.f32.mxu0 0.0
  %1232 = vmatmul.mubr.f32.gmra.mxu0 %v885
  %v1233 = vpop.f32.mrf.mxu0
  %v1234 = vadd.f32 %v740, %v1233
  %v1235 = vpop.f32.mrf.mxu0
  %1236 = vmatprep.mubr.f32.mxu0 0.0
  %1237 = vmatmul.mubr.f32.gmra.mxu0 %v888
  %v1238 = vpop.f32.mrf.mxu0
  %v1239 = vadd.f32 %v740, %v1238
  %v1240 = vpop.f32.mrf.mxu0
  %1241 = vmatprep.mubr.f32.mxu0 0.0
  %1242 = vmatmul.mubr.f32.gmra.mxu0 %v891
  %v1243 = vpop.f32.mrf.mxu0
  %v1244 = vadd.f32 %v740, %v1243
  %v1245 = vpop.f32.mrf.mxu0
  %1246 = vmatprep.mubr.f32.mxu0 0.0
  %1247 = vmatmul.mubr.f32.gmra.mxu0 %v894
  %v1248 = vpop.f32.mrf.mxu0
  %v1249 = vadd.f32 %v740, %v1248
  %v1250 = vpop.f32.mrf.mxu0
  %1251 = vmatprep.mubr.f32.mxu0 0.0
  %1252 = vmatmul.mubr.f32.gmra.mxu0 %v897
  %v1253 = vpop.f32.mrf.mxu0
  %v1254 = vadd.f32 %v740, %v1253
  %v1255 = vpop.f32.mrf.mxu0
  %1256 = vmatprep.mubr.f32.mxu0 0.0
  %1257 = vmatmul.mubr.f32.gmra.mxu0 %v900
  %v1258 = vpop.f32.mrf.mxu0
  %v1259 = vadd.f32 %v740, %v1258
  %v1260 = vpop.f32.mrf.mxu0
  %1261 = vmatprep.mubr.f32.mxu0 0.0
  %1262 = vmatmul.mubr.f32.gmra.mxu0 %v903
  %v1263 = vpop.f32.mrf.mxu0
  %v1264 = vadd.f32 %v740, %v1263
  %v1265 = vpop.f32.mrf.mxu0
  %1266 = vmatprep.mubr.f32.mxu0 0.0
  %1267 = vmatmul.mubr.f32.gmra.mxu0 %v906
  %v1268 = vpop.f32.mrf.mxu0
  %v1269 = vadd.f32 %v740, %v1268
  %v1270 = vpop.f32.mrf.mxu0
  %1271 = vmatprep.mubr.f32.mxu0 0.0
  %1272 = vmatmul.mubr.f32.gmra.mxu0 %v909
  %v1273 = vpop.f32.mrf.mxu0
  %v1274 = vadd.f32 %v740, %v1273
  %v1275 = vpop.f32.mrf.mxu0
  %1276 = vmatprep.mubr.f32.mxu0 0.0
  %1277 = vmatmul.mubr.f32.gmra.mxu0 %v912
  %v1278 = vpop.f32.mrf.mxu0
  %v1279 = vadd.f32 %v740, %v1278
  %v1280 = vpop.f32.mrf.mxu0
  %1281 = vmatprep.mubr.f32.mxu0 0.0
  %1282 = vmatmul.mubr.f32.gmra.mxu0 %v915
  %v1283 = vpop.f32.mrf.mxu0
  %v1284 = vadd.f32 %v740, %v1283
  %v1285 = vpop.f32.mrf.mxu0
  %1286 = vmatprep.mubr.f32.mxu0 0.0
  %1287 = vmatmul.mubr.f32.gmra.mxu0 %v918
  %v1288 = vpop.f32.mrf.mxu0
  %v1289 = vadd.f32 %v740, %v1288
  %v1290 = vpop.f32.mrf.mxu0
  %1291 = vmatprep.mubr.f32.mxu0 0.0
  %1292 = vmatmul.mubr.f32.gmra.mxu0 %v921
  %v1293 = vpop.f32.mrf.mxu0
  %v1294 = vadd.f32 %v740, %v1293
  %v1295 = vpop.f32.mrf.mxu0
  %1296 = vmatprep.mubr.f32.mxu0 0.0
  %1297 = vmatmul.mubr.f32.gmra.mxu0 %v924
  %v1298 = vpop.f32.mrf.mxu0
  %v1299 = vadd.f32 %v740, %v1298
  %v1300 = vpop.f32.mrf.mxu0
  %1301 = vmatprep.mubr.f32.mxu0 0.0
  %1302 = vmatmul.mubr.f32.gmra.mxu0 %v927
  %v1303 = vpop.f32.mrf.mxu0
  %v1304 = vadd.f32 %v740, %v1303
  %v1305 = vpop.f32.mrf.mxu0
  %1306 = vmatprep.mubr.f32.mxu0 0.0
  %1307 = vmatmul.mubr.f32.gmra.mxu0 %v930
  %v1308 = vpop.f32.mrf.mxu0
  %v1309 = vadd.f32 %v740, %v1308
  %v1310 = vpop.f32.mrf.mxu0
  %1311 = vdwg.mxu0
  %v1312 = vmax.f32 %v999, 0.0
  %v1313 = vmax.f32 %v1004, 0.0
  %v1314 = vmax.f32 %v1009, 0.0
  %v1315 = vmax.f32 %v1014, 0.0
  %v1316 = vmax.f32 %v1019, 0.0
  %v1317 = vmax.f32 %v1024, 0.0
  %v1318 = vmax.f32 %v1029, 0.0
  %v1319 = vmax.f32 %v1034, 0.0
  %v1320 = vmax.f32 %v1039, 0.0
  %v1321 = vmax.f32 %v1044, 0.0
  %v1322 = vmax.f32 %v1049, 0.0
  %v1323 = vmax.f32 %v1054, 0.0
  %v1324 = vmax.f32 %v1059, 0.0
  %v1325 = vmax.f32 %v1064, 0.0
  %v1326 = vmax.f32 %v1069, 0.0
  %v1327 = vmax.f32 %v1074, 0.0
  %v1328 = vmax.f32 %v1079, 0.0
  %v1329 = vmax.f32 %v1084, 0.0
  %v1330 = vmax.f32 %v1089, 0.0
  %v1331 = vmax.f32 %v1094, 0.0
  %v1332 = vmax.f32 %v1099, 0.0
  %v1333 = vmax.f32 %v1104, 0.0
  %v1334 = vmax.f32 %v1109, 0.0
  %v1335 = vmax.f32 %v1114, 0.0
  %v1336 = vmax.f32 %v1119, 0.0
  %v1337 = vmax.f32 %v1124, 0.0
  %v1338 = vmax.f32 %v1129, 0.0
  %v1339 = vmax.f32 %v1134, 0.0
  %v1340 = vmax.f32 %v1139, 0.0
  %v1341 = vmax.f32 %v1144, 0.0
  %v1342 = vmax.f32 %v1149, 0.0
  %v1343 = vmax.f32 %v1154, 0.0
  %v1344 = vmax.f32 %v1159, 0.0
  %v1345 = vmax.f32 %v1164, 0.0
  %v1346 = vmax.f32 %v1169, 0.0
  %v1347 = vmax.f32 %v1174, 0.0
  %v1348 = vmax.f32 %v1179, 0.0
  %v1349 = vmax.f32 %v1184, 0.0
  %v1350 = vmax.f32 %v1189, 0.0
  %v1351 = vmax.f32 %v1194, 0.0
  %v1352 = vmax.f32 %v1199, 0.0
  %v1353 = vmax.f32 %v1204, 0.0
  %v1354 = vmax.f32 %v1209, 0.0
  %v1355 = vmax.f32 %v1214, 0.0
  %v1356 = vmax.f32 %v1219, 0.0
  %v1357 = vmax.f32 %v1224, 0.0
  %v1358 = vmax.f32 %v1229, 0.0
  %v1359 = vmax.f32 %v1234, 0.0
  %v1360 = vmax.f32 %v1239, 0.0
  %v1361 = vmax.f32 %v1244, 0.0
  %v1362 = vmax.f32 %v1249, 0.0
  %v1363 = vmax.f32 %v1254, 0.0
  %v1364 = vmax.f32 %v1259, 0.0
  %v1365 = vmax.f32 %v1264, 0.0
  %v1366 = vmax.f32 %v1269, 0.0
  %v1367 = vmax.f32 %v1274, 0.0
  %v1368 = vmax.f32 %v1279, 0.0
  %v1369 = vmax.f32 %v1284, 0.0
  %v1370 = vmax.f32 %v1289, 0.0
  %v1371 = vmax.f32 %v1294, 0.0
  %v1372 = vmax.f32 %v1299, 0.0
  %v1373 = vmax.f32 %v1304, 0.0
  %v1374 = vmax.f32 %v1309, 0.0
  %1375 = vst.msk [vmem:[%s5] sm:$0xff] %vm94, %v1312
  %1376 = vst.msk [vmem:[%s5 + $0x8] sm:$0xff] %vm94, %v1313
  %1377 = vst.msk [vmem:[%s5 + $0x10] sm:$0xff] %vm94, %v1314
  %1378 = vst.msk [vmem:[%s5 + $0x18] sm:$0xff] %vm94, %v1315
  %1379 = vst.msk [vmem:[%s5 + $0x20] sm:$0xff] %vm94, %v1316
  %1380 = vst.msk [vmem:[%s5 + $0x28] sm:$0xff] %vm94, %v1317
  %1381 = vst.msk [vmem:[%s5 + $0x30] sm:$0xff] %vm94, %v1318
  %1382 = vst.msk [vmem:[%s5 + $0x38] sm:$0xff] %vm94, %v1319
  %1383 = vst.msk [vmem:[%s5 + $0x40] sm:$0xff] %vm94, %v1320
  %1384 = vst.msk [vmem:[%s5 + $0x48] sm:$0xff] %vm94, %v1321
  %1385 = vst.msk [vmem:[%s5 + $0x50] sm:$0xff] %vm94, %v1322
  %1386 = vst.msk [vmem:[%s5 + $0x58] sm:$0xff] %vm94, %v1323
  %1387 = vst.msk [vmem:[%s5 + $0x60] sm:$0xff] %vm94, %v1324
  %1388 = vst.msk [vmem:[%s5 + $0x68] sm:$0xff] %vm94, %v1325
  %1389 = vst.msk [vmem:[%s5 + $0x70] sm:$0xff] %vm94, %v1326
  %1390 = vst.msk [vmem:[%s5 + $0x78] sm:$0xff] %vm94, %v1327
  %1391 = vst.msk [vmem:[%s5 + $0x80] sm:$0xff] %vm94, %v1328
  %1392 = vst.msk [vmem:[%s5 + $0x88] sm:$0xff] %vm94, %v1329
  %1393 = vst.msk [vmem:[%s5 + $0x90] sm:$0xff] %vm94, %v1330
  %1394 = vst.msk [vmem:[%s5 + $0x98] sm:$0xff] %vm94, %v1331
  %1395 = vst.msk [vmem:[%s5 + $0xa0] sm:$0xff] %vm94, %v1332
  %1396 = vst.msk [vmem:[%s5 + $0xa8] sm:$0xff] %vm94, %v1333
  %1397 = vst.msk [vmem:[%s5 + $0xb0] sm:$0xff] %vm94, %v1334
  %1398 = vst.msk [vmem:[%s5 + $0xb8] sm:$0xff] %vm94, %v1335
  %1399 = vst.msk [vmem:[%s5 + $0xc0] sm:$0xff] %vm94, %v1336
  %1400 = vst.msk [vmem:[%s5 + $0xc8] sm:$0xff] %vm94, %v1337
  %1401 = vst.msk [vmem:[%s5 + $0xd0] sm:$0xff] %vm94, %v1338
  %1402 = vst.msk [vmem:[%s5 + $0xd8] sm:$0xff] %vm94, %v1339
  %1403 = vst.msk [vmem:[%s5 + $0xe0] sm:$0xff] %vm94, %v1340
  %1404 = vst.msk [vmem:[%s5 + $0xe8] sm:$0xff] %vm94, %v1341
  %1405 = vst.msk [vmem:[%s5 + $0xf0] sm:$0xff] %vm94, %v1342
  %1406 = vst.msk [vmem:[%s5 + $0xf8] sm:$0xff] %vm94, %v1343
  %1407 = vst.msk [vmem:[%s5 + $0x100] sm:$0xff] %vm94, %v1344
  %1408 = vst.msk [vmem:[%s5 + $0x108] sm:$0xff] %vm94, %v1345
  %1409 = vst.msk [vmem:[%s5 + $0x110] sm:$0xff] %vm94, %v1346
  %1410 = vst.msk [vmem:[%s5 + $0x118] sm:$0xff] %vm94, %v1347
  %1411 = vst.msk [vmem:[%s5 + $0x120] sm:$0xff] %vm94, %v1348
  %1412 = vst.msk [vmem:[%s5 + $0x128] sm:$0xff] %vm94, %v1349
  %1413 = vst.msk [vmem:[%s5 + $0x130] sm:$0xff] %vm94, %v1350
  %1414 = vst.msk [vmem:[%s5 + $0x138] sm:$0xff] %vm94, %v1351
  %1415 = vst.msk [vmem:[%s5 + $0x140] sm:$0xff] %vm94, %v1352
  %1416 = vst.msk [vmem:[%s5 + $0x148] sm:$0xff] %vm94, %v1353
  %1417 = vst.msk [vmem:[%s5 + $0x150] sm:$0xff] %vm94, %v1354
  %1418 = vst.msk [vmem:[%s5 + $0x158] sm:$0xff] %vm94, %v1355
  %1419 = vst.msk [vmem:[%s5 + $0x160] sm:$0xff] %vm94, %v1356
  %1420 = vst.msk [vmem:[%s5 + $0x168] sm:$0xff] %vm94, %v1357
  %1421 = vst.msk [vmem:[%s5 + $0x170] sm:$0xff] %vm94, %v1358
  %1422 = vst.msk [vmem:[%s5 + $0x178] sm:$0xff] %vm94, %v1359
  %1423 = vst.msk [vmem:[%s5 + $0x180] sm:$0xff] %vm94, %v1360
  %1424 = vst.msk [vmem:[%s5 + $0x188] sm:$0xff] %vm94, %v1361
  %1425 = vst.msk [vmem:[%s5 + $0x190] sm:$0xff] %vm94, %v1362
  %1426 = vst.msk [vmem:[%s5 + $0x198] sm:$0xff] %vm94, %v1363
  %1427 = vst.msk [vmem:[%s5 + $0x1a0] sm:$0xff] %vm94, %v1364
  %1428 = vst.msk [vmem:[%s5 + $0x1a8] sm:$0xff] %vm94, %v1365
  %1429 = vst.msk [vmem:[%s5 + $0x1b0] sm:$0xff] %vm94, %v1366
  %1430 = vst.msk [vmem:[%s5 + $0x1b8] sm:$0xff] %vm94, %v1367
  %1431 = vst.msk [vmem:[%s5 + $0x1c0] sm:$0xff] %vm94, %v1368
  %1432 = vst.msk [vmem:[%s5 + $0x1c8] sm:$0xff] %vm94, %v1369
  %1433 = vst.msk [vmem:[%s5 + $0x1d0] sm:$0xff] %vm94, %v1370
  %1434 = vst.msk [vmem:[%s5 + $0x1d8] sm:$0xff] %vm94, %v1371
  %1435 = vst.msk [vmem:[%s5 + $0x1e0] sm:$0xff] %vm94, %v1372
  %1436 = vst.msk [vmem:[%s5 + $0x1e8] sm:$0xff] %vm94, %v1373
  %1437 = vst.msk [vmem:[%s5 + $0x1f0] sm:$0xff] %vm94, %v1374
  // Predicated region
  $region22: #{_forward_impl.1} parent=0 // pred_check
    _
  $region23: #{_forward_impl.1} parent=0 // pred_check_branch
    %1439 = sbr.rel (0) target = $region25
  $region24: #{_forward_impl.1} parent=0 // pred_region
    _
  $region25: #{_forward_impl.1} parent=0 // pred_fallthru
    _
  // Predicated region
  $region26: #{_forward_impl.1} parent=0 // pred_check
    _
  $region27: #{_forward_impl.1} parent=0 // pred_check_branch
    %1441 = sbr.rel (0) target = $region29
  $region28: #{_forward_impl.1} parent=0 // pred_region
    _
  $region29: #{_forward_impl.1} parent=0 // pred_fallthru
    _

</llo_original>
